<compile_context>
chip_gen: v7x
topology: tpu7x:2x2x1
jax: 0.10.0
libtpu: 0.0.40
codegen_flags: <defaults>
</compile_context>

<pallas_src>
import jax
import jax.numpy as jnp
from jax.experimental import pallas as pl
from jax.experimental.pallas import tpu as pltpu

_LANES = 128
_MIN_ROWS = 8            # sublane granularity
_MAX_BLOCK_ROWS = 2048   # 2048 x 128 x 4B = 1 MiB per channel plane


def _point_light_kernel(params_ref, pts_ref, out_ref):
    # params (SMEM, f32[5]): [tx, ty, tz, tau, -gamma]
    tx = params_ref[0]
    ty = params_ref[1]
    tz = params_ref[2]
    tau = params_ref[3]
    neg_gamma = params_ref[4]

    # pts_ref: (3, BLOCK_ROWS, 128) channel-planar slab (lane-dense)
    dx = pts_ref[0] - tx
    dy = pts_ref[1] - ty
    dz = pts_ref[2] - tz

    dist_sq = dx * dx + dy * dy + dz * dz
    # 1 / (tau + d)^gamma == exp(-gamma * log(tau + d)),  tau + d > 0
    # -> two EUP ops per point, no division.
    out_ref[...] = jnp.exp(neg_gamma * jnp.log(tau + dist_sq))


def _so3_exp(r_vec):
    """Rodrigues formula: exp map of so(3) -> SO(3) rotation matrix."""
    rx, ry, rz = r_vec[0], r_vec[1], r_vec[2]
    theta2 = rx * rx + ry * ry + rz * rz
    theta = jnp.sqrt(theta2)
    K = jnp.array([[0.0, -rz, ry],
                   [rz, 0.0, -rx],
                   [-ry, rx, 0.0]], dtype=jnp.float32)
    eps = 1e-8
    A = jnp.where(theta < eps, 1.0, jnp.sin(theta) / jnp.maximum(theta, eps))
    B = jnp.where(theta < eps, 0.5,
                  (1.0 - jnp.cos(theta)) / jnp.maximum(theta2, eps * eps))
    return jnp.eye(3, dtype=jnp.float32) + A * K + B * (K @ K)


@jax.jit
def point_light_forward(pts, t_vec, gamma_log, tau_log):
    assert pts.shape[-1] == 3, "pts must have last dim 3"
    lead_shape = pts.shape[:-1]
    n = 1
    for s in lead_shape:
        n *= s

    # --- parameter glue (plain JAX): only t_vec, tau, -gamma are needed ---
    gamma = jnp.exp(gamma_log).astype(jnp.float32)
    tau = jnp.exp(tau_log).astype(jnp.float32)
    params = jnp.concatenate([
        t_vec.reshape(3).astype(jnp.float32),
        tau.reshape(1),
        (-gamma).reshape(1),
    ])

    # --- layout plumbing: (..., 3) -> channel-planar (3, M, 128) slab ---
    base_tile = _MIN_ROWS * _LANES                       # 1024 points
    pad_n = ((n + base_tile - 1) // base_tile) * base_tile
    m_rows = pad_n // _LANES                             # multiple of 8
    block_rows = min(_MAX_BLOCK_ROWS, m_rows)            # adaptive for small N
    grid = (m_rows + block_rows - 1) // block_rows
    m_rows = grid * block_rows                           # pad to whole blocks
    pad_n = m_rows * _LANES

    flat = pts.reshape(n, 3).astype(jnp.float32)
    flat = jnp.pad(flat, ((0, pad_n - n), (0, 0)))
    # single (N,3) -> (3,N) transpose (fused by XLA under jit), then the
    # free lane-dense planar view
    planar = flat.T.reshape(3, m_rows, _LANES)

    out = pl.pallas_call(
        _point_light_kernel,
        out_shape=jax.ShapeDtypeStruct((m_rows, _LANES), jnp.float32),
        grid_spec=pltpu.PrefetchScalarGridSpec(
            num_scalar_prefetch=0,
            grid=(grid,),
            in_specs=[
                # tiny parameter vector lives in SMEM, passed whole each step
                pl.BlockSpec(memory_space=pltpu.MemorySpace.SMEM),
                pl.BlockSpec((3, block_rows, _LANES), lambda i: (0, i, 0)),
            ],
            out_specs=pl.BlockSpec((block_rows, _LANES), lambda i: (i, 0)),
        ),
        compiler_params=pltpu.CompilerParams(
            dimension_semantics=("parallel",)),
    )(params, planar)

    return out.reshape(pad_n)[:n].reshape(lead_shape)


class PointLightSourcePallas:
    """JAX/Pallas port of PointLightSource (deterministic __init__ defaults)."""

    def __init__(self, t_x=-0.2266, t_y=-0.0022, t_z=0.0761,
                 r_x=-0.0027, r_y=0.36, r_z=-0.027,
                 gamma_log=-1.59, tau_log=-1.59):
        self.t_vec = jnp.array([t_x, t_y, t_z], dtype=jnp.float32)
        # Rotation kept only for interface fidelity / reference check; the
        # kernel does not need it because the rotation is norm-preserving.
        # TODO(synk): LieGroupParameter / autograd training machinery not
        # ported (forward pass only).
        self.R_l2c = _so3_exp(jnp.array([r_x, r_y, r_z], dtype=jnp.float32))
        self.gamma_log = jnp.float32(gamma_log)
        self.tau_log = jnp.float32(tau_log)

    def __call__(self, pts):
        return point_light_forward(pts, self.t_vec,
                                   self.gamma_log, self.tau_log)


if __name__ == "__main__":
    key = jax.random.PRNGKey(0)
    # pts: batch of 3D points in camera coordinates, shape (2, 300, 3)
    pts = jax.random.normal(key, (2, 300, 3), dtype=jnp.float32)

    light = PointLightSourcePallas()
    out = jax.block_until_ready(light(pts))
    assert out.shape == (2, 300) and out.dtype == jnp.float32

    # pure-JAX reference using the full rotation path (verifies the
    # norm-preserving simplification used inside the kernel)
    Rinv = light.R_l2c.T
    x_in_l = pts @ light.R_l2c + (-(Rinv @ light.t_vec))   # R^T p (row-vec form)
    dist_sq = jnp.sum(x_in_l * x_in_l, axis=-1)
    ref = 1.0 / jnp.power(jnp.exp(light.tau_log) + dist_sq,
                          jnp.exp(light.gamma_log))
    assert jnp.allclose(out, ref, rtol=1e-5, atol=1e-5), \
        f"max err {jnp.max(jnp.abs(out - ref))}"

    print("KERNEL_OK")
</pallas_src>

<mosaic_0001>
module attributes {stable_mosaic.version = 11 : i64} {
  func.func @_point_light_kernel(%arg0: i32, %arg1: memref<5xf32, #tpu.memory_space<smem>>, %arg2: memref<3x8x128xf32, #tpu.memory_space<vmem>>, %arg3: memref<8x128xf32, #tpu.memory_space<vmem>>) attributes {dimension_semantics = [#tpu.dimension_semantics<parallel>], iteration_bounds = array<i64: 1>, scalar_prefetch = 0 : i64, scratch_operands = 0 : i64, tpu.core_type = #tpu.core_type<tc>, window_params = [{transform_indices = @transform_0, window_bounds = array<i64: 5>}, {transform_indices = @transform_1, window_bounds = array<i64: 3, 8, 128>}, {transform_indices = @transform_2, window_bounds = array<i64: 8, 128>}]} {
    %c0 = arith.constant 0 : index
    %0 = memref.load %arg1[%c0] : memref<5xf32, #tpu.memory_space<smem>>
    %c1 = arith.constant 1 : index
    %1 = memref.load %arg1[%c1] : memref<5xf32, #tpu.memory_space<smem>>
    %c2 = arith.constant 2 : index
    %2 = memref.load %arg1[%c2] : memref<5xf32, #tpu.memory_space<smem>>
    %c3 = arith.constant 3 : index
    %3 = memref.load %arg1[%c3] : memref<5xf32, #tpu.memory_space<smem>>
    %c4 = arith.constant 4 : index
    %4 = memref.load %arg1[%c4] : memref<5xf32, #tpu.memory_space<smem>>
    %c0_0 = arith.constant 0 : index
    %c0_1 = arith.constant 0 : index
    %c0_2 = arith.constant 0 : index
    %5 = vector.load %arg2[%c0_0, %c0_1, %c0_2] : memref<3x8x128xf32, #tpu.memory_space<vmem>>, vector<1x8x128xf32>
    %6 = vector.shape_cast %5 : vector<1x8x128xf32> to vector<8x128xf32>
    %7 = vector.broadcast %0 : f32 to vector<8x128xf32>
    %8 = arith.subf %6, %7 : vector<8x128xf32>
    %c1_3 = arith.constant 1 : index
    %c0_4 = arith.constant 0 : index
    %c0_5 = arith.constant 0 : index
    %9 = vector.load %arg2[%c1_3, %c0_4, %c0_5] : memref<3x8x128xf32, #tpu.memory_space<vmem>>, vector<1x8x128xf32>
    %10 = vector.shape_cast %9 : vector<1x8x128xf32> to vector<8x128xf32>
    %11 = vector.broadcast %1 : f32 to vector<8x128xf32>
    %12 = arith.subf %10, %11 : vector<8x128xf32>
    %c2_6 = arith.constant 2 : index
    %c0_7 = arith.constant 0 : index
    %c0_8 = arith.constant 0 : index
    %13 = vector.load %arg2[%c2_6, %c0_7, %c0_8] : memref<3x8x128xf32, #tpu.memory_space<vmem>>, vector<1x8x128xf32>
    %14 = vector.shape_cast %13 : vector<1x8x128xf32> to vector<8x128xf32>
    %15 = vector.broadcast %2 : f32 to vector<8x128xf32>
    %16 = arith.subf %14, %15 : vector<8x128xf32>
    %17 = arith.mulf %8, %8 : vector<8x128xf32>
    %18 = arith.mulf %12, %12 : vector<8x128xf32>
    %19 = arith.addf %17, %18 : vector<8x128xf32>
    %20 = arith.mulf %16, %16 : vector<8x128xf32>
    %21 = arith.addf %19, %20 : vector<8x128xf32>
    %22 = vector.broadcast %3 : f32 to vector<8x128xf32>
    %23 = arith.addf %22, %21 : vector<8x128xf32>
    %24 = math.log %23 : vector<8x128xf32>
    %25 = vector.broadcast %4 : f32 to vector<8x128xf32>
    %26 = arith.mulf %25, %24 : vector<8x128xf32>
    %27 = math.exp %26 : vector<8x128xf32>
    %c0_9 = arith.constant 0 : index
    %c0_10 = arith.constant 0 : index
    %28 = vector.load %arg3[%c0_9, %c0_10] : memref<8x128xf32, #tpu.memory_space<vmem>>, vector<8x128xf32>
    tpu.vector_store %arg3[%c0_9, %c0_10], %27 {strides = array<i32>} : memref<8x128xf32, #tpu.memory_space<vmem>>, vector<8x128xf32>,
    return
  }
  func.func @transform_0(%arg0: i32) -> i32 {
    %c0_i32 = arith.constant 0 : i32
    %c0_i32_0 = arith.constant 0 : i32
    return %c0_i32 : i32
  }
  func.func @transform_1(%arg0: i32) -> (i32, i32, i32) {
    %c0_i32 = arith.constant 0 : i32
    %c0_i32_0 = arith.constant 0 : i32
    %c0_i32_1 = arith.constant 0 : i32
    return %c0_i32, %arg0, %c0_i32_0 : i32, i32, i32
  }
  func.func @transform_2(%arg0: i32) -> (i32, i32) {
    %c0_i32 = arith.constant 0 : i32
    %c0_i32_0 = arith.constant 0 : i32
    return %arg0, %c0_i32 : i32, i32
  }
}

</mosaic_0001>

<llo_original>
// kernel: point_light_forward.1
$region0: #{point_light_forward.1}
  #allocation0 [shape = 'u32[]', space=smem, size = 0x4, offset = 0x4, fixed_abs, tag = 'smem constant byte address 0x4 - core index']
  #allocation1 [shape = 'u32[144,128]{1,0:T(1,128)}', space=vmem, size = 0x12000, scoped, tag = 'internal scratch']
  %s0 = inlined_call_operand.vmem [shape: f32[5], index: 0, kind: input, shape index: {}]
  %s1 = inlined_call_operand.vmem [shape: f32[3,8,128], index: 1, kind: input, shape index: {}]
  %s2 = inlined_call_operand.vmem [shape: f32[8,128], index: 2, kind: output, shape index: {}]
  %s3 = sld [smem:[#allocation0]]
  $region22: #{point_light_forward.1} parent=0
    _
  %s5 = ssub.s32 1, %s3
  %s6 = scalar_select 0, %s5, %s3
  $region1: #{point_light_forward.1} parent=0
    #allocation2 [shape = 'u8[512]{0}', space=smem, size = 0x200, scoped, tag = 'input window, operand 0, single buffered']
    #allocation3 [shape = 's32[1]{0}', space=sflag, size = 0x4, scoped, tag = 'scoped memory for point_light_forward.1']
    %7 = vsyncpa [#allocation3], 0
    // Predicated region
    $region2: #{point_light_forward.1} parent=1 // pred_check
      _
    $region3: #{point_light_forward.1} parent=1 // pred_check_branch
      %9 = sbr.rel (0) target = $region5
    $region4: #{point_light_forward.1} parent=1 // pred_region
      %s11 = ssub.s32 16, 16
      %12 = vsyncadd [#allocation3], %s11
      %s14 = sshll.u32 %s0, 4
      %s15 = int_to_ptr.vmem [resolvable:$true] %s14
      %17 = dma.vmem_to_smem %s15, 16, [#allocation2], [#allocation3]
    $region5: #{point_light_forward.1} parent=1 // pred_fallthru
      _
    // Predicated region
    $region6: #{point_light_forward.1} parent=1 // pred_check
      _
    $region7: #{point_light_forward.1} parent=1 // pred_check_branch
      %19 = sbr.rel (0) target = $region9
    $region8: #{point_light_forward.1} parent=1 // pred_region
      _
    $region9: #{point_light_forward.1} parent=1 // pred_fallthru
      _
    // Predicated region
    $region10: #{point_light_forward.1} parent=1 // pred_check
      _
    $region11: #{point_light_forward.1} parent=1 // pred_check_branch
      %21 = sbr.rel (0) target = $region13
    $region12: #{point_light_forward.1} parent=1 // pred_region
      %22 = dma.done [#allocation3], 16
    $region13: #{point_light_forward.1} parent=1 // pred_fallthru
      _
    %23 = sfence
    %s24 = sld [smem:[#allocation2]]
    %s25 = sld [smem:[#allocation2 + $0x1]]
    %s26 = sld [smem:[#allocation2 + $0x2]]
    %s27 = sld [smem:[#allocation2 + $0x3]]
    %s28 = sld [smem:[#allocation2 + $0x4]]
    %v29 = vld [vmem:[%s1] sm:$0xff]
    %v30 = vstv %s24
    %v31 = vsub.f32 %v29, %v30
    %s32 = scalar_lea.vmem %s1, 8
    %v33 = vld [vmem:[%s32] sm:$0xff]
    %v34 = vstv %s25
    %v35 = vsub.f32 %v33, %v34
    %s36 = scalar_lea.vmem %s1, 16
    %v37 = vld [vmem:[%s36] sm:$0xff]
    %v38 = vstv %s26
    %v39 = vsub.f32 %v37, %v38
    %v40 = vmul.f32 %v31, %v31
    %v41 = vmul.f32 %v35, %v35
    %v42 = vadd.f32 %v40, %v41
    %v43 = vmul.f32 %v39, %v39
    %v44 = vadd.f32 %v42, %v43
    %v45 = vstv %s27
    %v46 = vadd.f32 %v45, %v44
    %v47 = vlog2.pop %v46
    %v48 = vmul.f32 %v47, 0.6931472
    %v49 = vstv %s28
    %v50 = vmul.f32 %v49, %v48
    %v51 = vmul.f32 %v50, 1.442695
    %v52 = vpow.pop %v51
    %53 = vst [vmem:[%s2] sm:$0xff] %v52
    // Predicated region
    $region14: #{point_light_forward.1} parent=1 // pred_check
      _
    $region15: #{point_light_forward.1} parent=1 // pred_check_branch
      %55 = sbr.rel (0) target = $region17
    $region16: #{point_light_forward.1} parent=1 // pred_region
      _
    $region17: #{point_light_forward.1} parent=1 // pred_fallthru
      _
    // Predicated region
    $region18: #{point_light_forward.1} parent=1 // pred_check
      _
    $region19: #{point_light_forward.1} parent=1 // pred_check_branch
      %57 = sbr.rel (0) target = $region21
    $region20: #{point_light_forward.1} parent=1 // pred_region
      _
    $region21: #{point_light_forward.1} parent=1 // pred_fallthru
      _
    %58 = vsyncpa [#allocation3], 1

</llo_original>
